<compile_context>
chip_gen: v7x
topology: tpu7x:2x2x1
jax: 0.10.0
libtpu: 0.0.40
codegen_flags: <defaults>
</compile_context>

<pallas_src>
import functools

import jax
import jax.numpy as jnp
from jax.experimental import pallas as pl
from jax.experimental.pallas import tpu as pltpu


_LANE = 128      # every feature dim padded to a multiple of this
_SUBLANE = 8     # batch padded to a multiple of this
_BN_EPS = 1e-5

_VMEM = pl.BlockSpec(memory_space=pltpu.MemorySpace.VMEM)


def _round_up(n, m):
    return ((n + m - 1) // m) * m


# ----------------------------------------------------------------------------
# Fused kernel: all Residual blocks + final Linear in a single pallas_call.
# Ref order: x, (W_k, gamma_k, beta_k) * n_layers, W_final, b_final, out, slab.
# ----------------------------------------------------------------------------
def _fused_generator_kernel(*refs, g_pads, e_pad, total_pad, batch_real, batch_pad):
    n_layers = len(g_pads)
    x_ref = refs[0]
    wf_ref = refs[1 + 3 * n_layers]
    bf_ref = refs[2 + 3 * n_layers]
    out_ref = refs[3 + 3 * n_layers]
    slab = refs[4 + 3 * n_layers]          # VMEM scratch [batch_pad, total_pad] (bf16)

    masked = batch_pad != batch_real       # BN stats must ignore padded rows
    if masked:
        row_mask = (
            jax.lax.broadcasted_iota(jnp.int32, (batch_pad, 1), 0) < batch_real
        )
    inv_b = jnp.float32(1.0 / batch_real)

    # The running concat cat([h_k, ..., h_1, x0]) is laid out back-to-front in
    # the slab: each block writes only its own 128-lane-aligned slice and the
    # older activations are never copied again.
    off = total_pad - e_pad
    slab[:, off:] = x_ref[...]

    for k in range(n_layers):
        w_ref, g_ref, be_ref = refs[1 + 3 * k:4 + 3 * k]
        cur = slab[:, off:]                                    # [B, D_k] bf16, aligned
        # Linear (bf16 MXU operands, f32 accumulation).  The fc bias is dropped:
        # training-mode BN subtracts the per-column mean, so it cancels exactly.
        h = jnp.dot(cur, w_ref[...], preferred_element_type=jnp.float32)
        # BatchNorm1d, training mode: batch mean / biased variance, f32 stats.
        if masked:
            h = jnp.where(row_mask, h, 0.0)
            mean = jnp.sum(h, axis=0, keepdims=True) * inv_b
            diff = jnp.where(row_mask, h - mean, 0.0)
        else:
            mean = jnp.sum(h, axis=0, keepdims=True) * inv_b
            diff = h - mean
        var = jnp.sum(diff * diff, axis=0, keepdims=True) * inv_b
        # Fold BN into one scale/shift FMA:  h*scale + shift  (padded lanes stay 0).
        scale = g_ref[...] * jax.lax.rsqrt(var + _BN_EPS)
        shift = be_ref[...] - mean * scale
        h_act = jnp.maximum(h * scale + shift, 0.0)            # ReLU (f32)
        off -= g_pads[k]
        slab[:, off:off + g_pads[k]] = h_act.astype(slab.dtype)  # "concat" = slot write

    # Final Linear on the full concat (off == 0 by construction), f32 output.
    out_ref[...] = jnp.dot(
        slab[...], wf_ref[...], preferred_element_type=jnp.float32
    ) + bf_ref[...]


# ----------------------------------------------------------------------------
# One-time parameter preparation (padding + casting hoisted out of the call path).
# ----------------------------------------------------------------------------
def _pad_cols(a, out_pad):
    out = a.shape[1]
    if out_pad == out:
        return a
    return jnp.concatenate(
        [a, jnp.zeros((a.shape[0], out_pad - out), a.dtype)], axis=1)


def _pad_weight_segmented(w, seg_sizes, seg_pads, out_pad):
    """Zero-pad each input-row segment of W to its lane-aligned size; pad cols."""
    out = w.shape[1]
    rows, start = [], 0
    for s, sp in zip(seg_sizes, seg_pads):
        rows.append(w[start:start + s])
        if sp > s:
            rows.append(jnp.zeros((sp - s, out), w.dtype))
        start += s
    return _pad_cols(jnp.concatenate(rows, axis=0), out_pad)


def prepare_generator(params, weight_dtype=jnp.bfloat16):
    """Pad + cast all parameters ONCE. Returns (static meta, array tuple)."""
    embedding_dim = int(params["residuals"][0]["w"].shape[0]) if params["residuals"] \
        else int(params["final"]["w"].shape[0])
    gen_dims = tuple(int(p["w"].shape[1]) for p in params["residuals"])
    data_dim = int(params["final"]["w"].shape[1])

    e_pad = _round_up(embedding_dim, _LANE)
    g_pads = tuple(_round_up(g, _LANE) for g in gen_dims)
    data_pad = _round_up(data_dim, _LANE)
    total_pad = e_pad + sum(g_pads)

    arrays = []
    for k, p in enumerate(params["residuals"]):
        # Input feature order for block k: [h_{k-1}, ..., h_0, x0].
        seg_sizes = list(gen_dims[:k][::-1]) + [embedding_dim]
        seg_pads = list(g_pads[:k][::-1]) + [e_pad]
        arrays.append(_pad_weight_segmented(
            p["w"], seg_sizes, seg_pads, g_pads[k]).astype(weight_dtype))
        arrays.append(_pad_cols(p["gamma"], g_pads[k]).astype(jnp.float32))
        arrays.append(_pad_cols(p["beta"], g_pads[k]).astype(jnp.float32))
        # NOTE: p["b"] intentionally not passed — it cancels inside training-mode BN.
    seg_sizes = list(gen_dims[::-1]) + [embedding_dim]
    seg_pads = list(g_pads[::-1]) + [e_pad]
    arrays.append(_pad_weight_segmented(
        params["final"]["w"], seg_sizes, seg_pads, data_pad).astype(weight_dtype))
    arrays.append(_pad_cols(params["final"]["b"], data_pad).astype(jnp.float32))

    meta = dict(
        embedding_dim=embedding_dim, gen_dims=gen_dims, data_dim=data_dim,
        e_pad=e_pad, g_pads=g_pads, data_pad=data_pad, total_pad=total_pad,
        act_dtype=weight_dtype,
    )
    return meta, tuple(arrays)


# ----------------------------------------------------------------------------
# Forward wrapper (meta is static via functools.partial; arrays/x are traced).
# ----------------------------------------------------------------------------
def generator_forward(meta, arrays, x):
    batch, embedding_dim = x.shape
    assert embedding_dim == meta["embedding_dim"]
    e_pad, data_pad, total_pad = meta["e_pad"], meta["data_pad"], meta["total_pad"]
    act_dtype = meta["act_dtype"]
    b_pad = _round_up(batch, _SUBLANE)

    x_p = jnp.pad(
        x.astype(jnp.float32),
        ((0, b_pad - batch), (0, e_pad - embedding_dim)),
    ).astype(act_dtype)

    kernel = functools.partial(
        _fused_generator_kernel,
        g_pads=meta["g_pads"], e_pad=e_pad, total_pad=total_pad,
        batch_real=batch, batch_pad=b_pad,
    )

    itemsize = jnp.dtype(act_dtype).itemsize
    vmem_bytes = (
        b_pad * total_pad * itemsize                                 # slab scratch
        + b_pad * e_pad * itemsize                                   # input tile
        + b_pad * data_pad * 4                                       # output tile
        + sum(int(a.size) * a.dtype.itemsize for a in arrays)        # params
    )
    try:
        vmem_cap = int(pltpu.get_tpu_info().vmem_capacity_bytes)
    except Exception:
        vmem_cap = 64 << 20  # conservative (v7x per-TC) fallback
    # No grid -> no double buffering; ~1.3x headroom, capped at ~75% of capacity.
    vmem_limit = min(max(int(vmem_bytes * 1.3), 16 << 20), int(vmem_cap * 0.75))

    inputs = (x_p,) + tuple(arrays)
    out_p = pl.pallas_call(
        kernel,
        out_shape=jax.ShapeDtypeStruct((b_pad, data_pad), jnp.float32),
        in_specs=[_VMEM] * len(inputs),
        out_specs=_VMEM,
        scratch_shapes=[pltpu.VMEM((b_pad, total_pad), act_dtype)],
        compiler_params=pltpu.CompilerParams(vmem_limit_bytes=vmem_limit),
    )(*inputs)
    return out_p[:batch, :meta["data_dim"]]


# ----------------------------------------------------------------------------
# Generator parameters (deterministic, matching the PyTorch module's shapes).
# ----------------------------------------------------------------------------
def init_generator_params(key, embedding_dim, generator_dim, data_dim):
    params = {"residuals": []}
    dim = embedding_dim
    for item in generator_dim:
        key, kw, kb = jax.random.split(key, 3)
        bound = 1.0 / jnp.sqrt(dim)
        params["residuals"].append(
            dict(
                w=jax.random.uniform(kw, (dim, item), jnp.float32, -bound, bound),
                b=jax.random.uniform(kb, (1, item), jnp.float32, -bound, bound),
                gamma=jnp.ones((1, item), jnp.float32),   # BatchNorm1d default weight
                beta=jnp.zeros((1, item), jnp.float32),   # BatchNorm1d default bias
            )
        )
        dim += item
    key, kw, kb = jax.random.split(key, 3)
    bound = 1.0 / jnp.sqrt(dim)
    params["final"] = dict(
        w=jax.random.uniform(kw, (dim, data_dim), jnp.float32, -bound, bound),
        b=jax.random.uniform(kb, (1, data_dim), jnp.float32, -bound, bound),
    )
    return params


# ----------------------------------------------------------------------------
# Pure-JAX f32 reference (same math as the PyTorch module, no Pallas).
# ----------------------------------------------------------------------------
def generator_reference(params, x):
    for p in params["residuals"]:
        h = x @ p["w"] + p["b"]
        mean = jnp.mean(h, axis=0, keepdims=True)
        var = jnp.mean((h - mean) ** 2, axis=0, keepdims=True)
        h = (h - mean) / jnp.sqrt(var + _BN_EPS)
        h = h * p["gamma"] + p["beta"]
        h = jnp.maximum(h, 0.0)
        x = jnp.concatenate([h, x], axis=1)
    p = params["final"]
    return x @ p["w"] + p["b"]


if __name__ == "__main__":
    # Small shapes consistent with the module's forward.
    batch = 8
    embedding_dim = 32
    generator_dim = (32, 32)
    data_dim = 16

    key = jax.random.PRNGKey(0)
    key, kx = jax.random.split(key)
    x = jax.random.normal(kx, (batch, embedding_dim), dtype=jnp.float32)

    params = init_generator_params(key, embedding_dim, generator_dim, data_dim)

    # One-time padding / bf16 cast (hoisted out of the per-call path).
    meta, arrays = prepare_generator(params)
    fwd = jax.jit(functools.partial(generator_forward, meta))

    out = fwd(arrays, x)
    out = jax.block_until_ready(out)

    ref = generator_reference(params, x)
    assert out.shape == (batch, data_dim), out.shape
    # bf16 MXU operands / bf16 activation slab -> relaxed parity vs f32 reference.
    assert jnp.allclose(out, ref, atol=3e-2, rtol=3e-2), "mismatch vs reference"

    print("KERNEL_OK")
</pallas_src>

<mosaic_0001>
module attributes {stable_mosaic.version = 11 : i64} {
  func.func @_fused_generator_kernel(%arg0: memref<8x128xbf16, #tpu.memory_space<vmem>>, %arg1: memref<128x128xbf16, #tpu.memory_space<vmem>>, %arg2: memref<1x128xf32, #tpu.memory_space<vmem>>, %arg3: memref<1x128xf32, #tpu.memory_space<vmem>>, %arg4: memref<256x128xbf16, #tpu.memory_space<vmem>>, %arg5: memref<1x128xf32, #tpu.memory_space<vmem>>, %arg6: memref<1x128xf32, #tpu.memory_space<vmem>>, %arg7: memref<384x128xbf16, #tpu.memory_space<vmem>>, %arg8: memref<1x128xf32, #tpu.memory_space<vmem>>, %arg9: memref<8x128xf32, #tpu.memory_space<vmem>>, %arg10: memref<8x384xbf16, #tpu.memory_space<vmem>>) attributes {dimension_semantics = [], scalar_prefetch = 0 : i64, scratch_operands = 1 : i64, tpu.core_type = #tpu.core_type<tc>} {
    %c0 = arith.constant 0 : index
    %c0_0 = arith.constant 0 : index
    %0 = vector.load %arg0[%c0, %c0_0] : memref<8x128xbf16, #tpu.memory_space<vmem>>, vector<8x128xbf16>
    %c0_1 = arith.constant 0 : index
    %c256 = arith.constant 256 : index
    %1 = vector.load %arg10[%c0_1, %c256] : memref<8x384xbf16, #tpu.memory_space<vmem>>, vector<8x128xbf16>
    tpu.vector_store %arg10[%c0_1, %c256], %0 {strides = array<i32>} : memref<8x384xbf16, #tpu.memory_space<vmem>>, vector<8x128xbf16>,
    %c0_2 = arith.constant 0 : index
    %c256_3 = arith.constant 256 : index
    %2 = vector.load %arg10[%c0_2, %c256_3] : memref<8x384xbf16, #tpu.memory_space<vmem>>, vector<8x128xbf16>
    %c0_4 = arith.constant 0 : index
    %c0_5 = arith.constant 0 : index
    %3 = vector.load %arg1[%c0_4, %c0_5] : memref<128x128xbf16, #tpu.memory_space<vmem>>, vector<128x128xbf16>
    %cst = arith.constant dense<0.000000e+00> : vector<8x128xf32>
    %4 = tpu.matmul %2, %3, %cst {dimension_numbers = #tpu.dot_dimension_numbers<[1], [0], [0], [1], [0, 0, 1, 1], [], []>} : vector<8x128xbf16>, vector<128x128xbf16>, vector<8x128xf32> -> vector<8x128xf32>
    %cst_6 = arith.constant dense<0.000000e+00> : vector<128xf32>
    %5 = vector.multi_reduction <add>, %4, %cst_6 [0] : vector<8x128xf32> to vector<128xf32>
    %6 = vector.shape_cast %5 : vector<128xf32> to vector<1x128xf32>
    %cst_7 = arith.constant 1.250000e-01 : f32
    %7 = vector.broadcast %cst_7 : f32 to vector<1x128xf32>
    %8 = arith.mulf %6, %7 : vector<1x128xf32>
    %9 = vector.broadcast %8 : vector<1x128xf32> to vector<8x128xf32>
    %10 = arith.subf %4, %9 : vector<8x128xf32>
    %11 = arith.mulf %10, %10 : vector<8x128xf32>
    %cst_8 = arith.constant dense<0.000000e+00> : vector<128xf32>
    %12 = vector.multi_reduction <add>, %11, %cst_8 [0] : vector<8x128xf32> to vector<128xf32>
    %13 = vector.shape_cast %12 : vector<128xf32> to vector<1x128xf32>
    %cst_9 = arith.constant 1.250000e-01 : f32
    %14 = vector.broadcast %cst_9 : f32 to vector<1x128xf32>
    %15 = arith.mulf %13, %14 : vector<1x128xf32>
    %c0_10 = arith.constant 0 : index
    %c0_11 = arith.constant 0 : index
    %16 = vector.load %arg2[%c0_10, %c0_11] : memref<1x128xf32, #tpu.memory_space<vmem>>, vector<1x128xf32>
    %cst_12 = arith.constant 9.99999974E-6 : f32
    %17 = vector.broadcast %cst_12 : f32 to vector<1x128xf32>
    %18 = arith.addf %15, %17 : vector<1x128xf32>
    %19 = math.rsqrt %18 : vector<1x128xf32>
    %20 = arith.mulf %16, %19 : vector<1x128xf32>
    %c0_13 = arith.constant 0 : index
    %c0_14 = arith.constant 0 : index
    %21 = vector.load %arg3[%c0_13, %c0_14] : memref<1x128xf32, #tpu.memory_space<vmem>>, vector<1x128xf32>
    %22 = arith.mulf %8, %20 : vector<1x128xf32>
    %23 = arith.subf %21, %22 : vector<1x128xf32>
    %24 = vector.broadcast %20 : vector<1x128xf32> to vector<8x128xf32>
    %25 = arith.mulf %4, %24 : vector<8x128xf32>
    %26 = vector.broadcast %23 : vector<1x128xf32> to vector<8x128xf32>
    %27 = arith.addf %25, %26 : vector<8x128xf32>
    %cst_15 = arith.constant 0.000000e+00 : f32
    %28 = vector.broadcast %cst_15 : f32 to vector<8x128xf32>
    %29 = arith.maximumf %27, %28 : vector<8x128xf32>
    %30 = arith.truncf %29 : vector<8x128xf32> to vector<8x128xbf16>
    %c0_16 = arith.constant 0 : index
    %c128 = arith.constant 128 : index
    %31 = vector.load %arg10[%c0_16, %c128] : memref<8x384xbf16, #tpu.memory_space<vmem>>, vector<8x128xbf16>
    tpu.vector_store %arg10[%c0_16, %c128], %30 {strides = array<i32>} : memref<8x384xbf16, #tpu.memory_space<vmem>>, vector<8x128xbf16>,
    %c0_17 = arith.constant 0 : index
    %c128_18 = arith.constant 128 : index
    %32 = vector.load %arg10[%c0_17, %c128_18] : memref<8x384xbf16, #tpu.memory_space<vmem>>, vector<8x256xbf16>
    %c0_19 = arith.constant 0 : index
    %c0_20 = arith.constant 0 : index
    %33 = vector.load %arg4[%c0_19, %c0_20] : memref<256x128xbf16, #tpu.memory_space<vmem>>, vector<256x128xbf16>
    %cst_21 = arith.constant dense<0.000000e+00> : vector<8x128xf32>
    %34 = tpu.matmul %32, %33, %cst_21 {dimension_numbers = #tpu.dot_dimension_numbers<[1], [0], [0], [1], [0, 0, 1, 1], [], []>} : vector<8x256xbf16>, vector<256x128xbf16>, vector<8x128xf32> -> vector<8x128xf32>
    %cst_22 = arith.constant dense<0.000000e+00> : vector<128xf32>
    %35 = vector.multi_reduction <add>, %34, %cst_22 [0] : vector<8x128xf32> to vector<128xf32>
    %36 = vector.shape_cast %35 : vector<128xf32> to vector<1x128xf32>
    %cst_23 = arith.constant 1.250000e-01 : f32
    %37 = vector.broadcast %cst_23 : f32 to vector<1x128xf32>
    %38 = arith.mulf %36, %37 : vector<1x128xf32>
    %39 = vector.broadcast %38 : vector<1x128xf32> to vector<8x128xf32>
    %40 = arith.subf %34, %39 : vector<8x128xf32>
    %41 = arith.mulf %40, %40 : vector<8x128xf32>
    %cst_24 = arith.constant dense<0.000000e+00> : vector<128xf32>
    %42 = vector.multi_reduction <add>, %41, %cst_24 [0] : vector<8x128xf32> to vector<128xf32>
    %43 = vector.shape_cast %42 : vector<128xf32> to vector<1x128xf32>
    %cst_25 = arith.constant 1.250000e-01 : f32
    %44 = vector.broadcast %cst_25 : f32 to vector<1x128xf32>
    %45 = arith.mulf %43, %44 : vector<1x128xf32>
    %c0_26 = arith.constant 0 : index
    %c0_27 = arith.constant 0 : index
    %46 = vector.load %arg5[%c0_26, %c0_27] : memref<1x128xf32, #tpu.memory_space<vmem>>, vector<1x128xf32>
    %cst_28 = arith.constant 9.99999974E-6 : f32
    %47 = vector.broadcast %cst_28 : f32 to vector<1x128xf32>
    %48 = arith.addf %45, %47 : vector<1x128xf32>
    %49 = math.rsqrt %48 : vector<1x128xf32>
    %50 = arith.mulf %46, %49 : vector<1x128xf32>
    %c0_29 = arith.constant 0 : index
    %c0_30 = arith.constant 0 : index
    %51 = vector.load %arg6[%c0_29, %c0_30] : memref<1x128xf32, #tpu.memory_space<vmem>>, vector<1x128xf32>
    %52 = arith.mulf %38, %50 : vector<1x128xf32>
    %53 = arith.subf %51, %52 : vector<1x128xf32>
    %54 = vector.broadcast %50 : vector<1x128xf32> to vector<8x128xf32>
    %55 = arith.mulf %34, %54 : vector<8x128xf32>
    %56 = vector.broadcast %53 : vector<1x128xf32> to vector<8x128xf32>
    %57 = arith.addf %55, %56 : vector<8x128xf32>
    %cst_31 = arith.constant 0.000000e+00 : f32
    %58 = vector.broadcast %cst_31 : f32 to vector<8x128xf32>
    %59 = arith.maximumf %57, %58 : vector<8x128xf32>
    %60 = arith.truncf %59 : vector<8x128xf32> to vector<8x128xbf16>
    %c0_32 = arith.constant 0 : index
    %c0_33 = arith.constant 0 : index
    %61 = vector.load %arg10[%c0_32, %c0_33] : memref<8x384xbf16, #tpu.memory_space<vmem>>, vector<8x128xbf16>
    tpu.vector_store %arg10[%c0_32, %c0_33], %60 {strides = array<i32>} : memref<8x384xbf16, #tpu.memory_space<vmem>>, vector<8x128xbf16>,
    %c0_34 = arith.constant 0 : index
    %c0_35 = arith.constant 0 : index
    %62 = vector.load %arg10[%c0_34, %c0_35] : memref<8x384xbf16, #tpu.memory_space<vmem>>, vector<8x384xbf16>
    %c0_36 = arith.constant 0 : index
    %c0_37 = arith.constant 0 : index
    %63 = vector.load %arg7[%c0_36, %c0_37] : memref<384x128xbf16, #tpu.memory_space<vmem>>, vector<384x128xbf16>
    %cst_38 = arith.constant dense<0.000000e+00> : vector<8x128xf32>
    %64 = tpu.matmul %62, %63, %cst_38 {dimension_numbers = #tpu.dot_dimension_numbers<[1], [0], [0], [1], [0, 0, 1, 1], [], []>} : vector<8x384xbf16>, vector<384x128xbf16>, vector<8x128xf32> -> vector<8x128xf32>
    %c0_39 = arith.constant 0 : index
    %c0_40 = arith.constant 0 : index
    %65 = vector.load %arg8[%c0_39, %c0_40] : memref<1x128xf32, #tpu.memory_space<vmem>>, vector<1x128xf32>
    %66 = vector.broadcast %65 : vector<1x128xf32> to vector<8x128xf32>
    %67 = arith.addf %64, %66 : vector<8x128xf32>
    %c0_41 = arith.constant 0 : index
    %c0_42 = arith.constant 0 : index
    %68 = vector.load %arg9[%c0_41, %c0_42] : memref<8x128xf32, #tpu.memory_space<vmem>>, vector<8x128xf32>
    tpu.vector_store %arg9[%c0_41, %c0_42], %67 {strides = array<i32>} : memref<8x128xf32, #tpu.memory_space<vmem>>, vector<8x128xf32>,
    return
  }
}

</mosaic_0001>

<llo_original>
// kernel: generator_forward.1
$region0: #{generator_forward.1}
  #allocation0 [shape = 'u32[]', space=smem, size = 0x4, offset = 0x4, fixed_abs, tag = 'smem constant byte address 0x4 - core index']
  #allocation1 [shape = 'u32[144,128]{1,0:T(1,128)}', space=vmem, size = 0x12000, scoped, tag = 'internal scratch']
  #allocation2 [shape = 'bf16[8,384]{1,0:T(8,128)(2,1)}', space=vmem, size = 0x1800, scoped, tag = 'scratch operand']
  %s0 = inlined_call_operand.vmem [shape: bf16[8,128], index: 0, kind: input, shape index: {}]
  %s1 = inlined_call_operand.hbm [shape: bf16[128,128], index: 1, kind: input, shape index: {}]
  %s2 = inlined_call_operand.vmem [shape: f32[1,128], index: 2, kind: input, shape index: {}]
  %s3 = inlined_call_operand.vmem [shape: f32[1,128], index: 3, kind: input, shape index: {}]
  %s4 = inlined_call_operand.hbm [shape: bf16[256,128], index: 4, kind: input, shape index: {}]
  %s5 = inlined_call_operand.vmem [shape: f32[1,128], index: 5, kind: input, shape index: {}]
  %s6 = inlined_call_operand.vmem [shape: f32[1,128], index: 6, kind: input, shape index: {}]
  %s7 = inlined_call_operand.hbm [shape: bf16[384,128], index: 7, kind: input, shape index: {}]
  %s8 = inlined_call_operand.vmem [shape: f32[1,128], index: 8, kind: input, shape index: {}]
  %s9 = inlined_call_operand.hbm [shape: f32[8,128], index: 9, kind: output, shape index: {}]
  %s10 = sld [smem:[#allocation0]]
  $region58: #{generator_forward.1} parent=0
    _
  %s12 = ssub.s32 1, %s10
  %s13 = scalar_select 0, %s12, %s10
  $region1: #{generator_forward.1} parent=0
    #allocation3 [shape = 'u8[32768]{0}', space=vmem, size = 0x8000, scoped, tag = 'input window, operand 1, single buffered']
    #allocation4 [shape = 's32[1]{0}', space=sflag, size = 0x4, scoped, tag = 'scoped memory for generator_forward.1']
    #allocation5 [shape = 's32[1]{0}', space=sflag, size = 0x4, scoped, tag = 'scoped memory for generator_forward.1']
    #allocation6 [shape = 'u8[65536]{0}', space=vmem, size = 0x10000, scoped, tag = 'input window, operand 4, single buffered']
    #allocation7 [shape = 's32[1]{0}', space=sflag, size = 0x4, scoped, tag = 'scoped memory for generator_forward.1']
    #allocation8 [shape = 'u8[98304]{0}', space=vmem, size = 0x18000, scoped, tag = 'input window, operand 7, single buffered']
    #allocation9 [shape = 'u8[4096]{0}', space=vmem, size = 0x1000, scoped, tag = 'output window, operand 0, single buffered']
    %14 = vsyncpa [#allocation4], 0
    %15 = vsyncpa [#allocation7], 0
    %16 = vsyncpa [#allocation5], 0
    // Predicated region
    $region2: #{generator_forward.1} parent=1 // pred_check
      _
    $region3: #{generator_forward.1} parent=1 // pred_check_branch
      %18 = sbr.rel (0) target = $region5
    $region4: #{generator_forward.1} parent=1 // pred_region
      _
    $region5: #{generator_forward.1} parent=1 // pred_fallthru
      _
    // Predicated region
    $region6: #{generator_forward.1} parent=1 // pred_check
      _
    $region7: #{generator_forward.1} parent=1 // pred_check_branch
      %20 = sbr.rel (0) target = $region9
    $region8: #{generator_forward.1} parent=1 // pred_region
      %s22 = ssub.s32 1024, 1024
      %23 = vsyncadd [#allocation4], %s22
      %s24 = sshll.u32 [#allocation3], 4
      %s25 = int_to_ptr.vmem [resolvable:$true] %s24
      %30 = dma.hbm_to_vmem [thread:$0]  %s1, 1024, %s25, [#allocation4], 64, 64, 4
    $region9: #{generator_forward.1} parent=1 // pred_fallthru
      _
    // Predicated region
    $region10: #{generator_forward.1} parent=1 // pred_check
      _
    $region11: #{generator_forward.1} parent=1 // pred_check_branch
      %32 = sbr.rel (0) target = $region13
    $region12: #{generator_forward.1} parent=1 // pred_region
      _
    $region13: #{generator_forward.1} parent=1 // pred_fallthru
      _
    // Predicated region
    $region14: #{generator_forward.1} parent=1 // pred_check
      _
    $region15: #{generator_forward.1} parent=1 // pred_check_branch
      %34 = sbr.rel (0) target = $region17
    $region16: #{generator_forward.1} parent=1 // pred_region
      _
    $region17: #{generator_forward.1} parent=1 // pred_fallthru
      _
    // Predicated region
    $region18: #{generator_forward.1} parent=1 // pred_check
      _
    $region19: #{generator_forward.1} parent=1 // pred_check_branch
      %36 = sbr.rel (0) target = $region21
    $region20: #{generator_forward.1} parent=1 // pred_region
      %s38 = ssub.s32 2048, 2048
      %39 = vsyncadd [#allocation7], %s38
      %s40 = sshll.u32 [#allocation6], 4
      %s41 = int_to_ptr.vmem [resolvable:$true] %s40
      %46 = dma.hbm_to_vmem [thread:$0]  %s4, 2048, %s41, [#allocation7], 64, 64, 4
    $region21: #{generator_forward.1} parent=1 // pred_fallthru
      _
    // Predicated region
    $region22: #{generator_forward.1} parent=1 // pred_check
      _
    $region23: #{generator_forward.1} parent=1 // pred_check_branch
      %48 = sbr.rel (0) target = $region25
    $region24: #{generator_forward.1} parent=1 // pred_region
      _
    $region25: #{generator_forward.1} parent=1 // pred_fallthru
      _
    // Predicated region
    $region26: #{generator_forward.1} parent=1 // pred_check
      _
    $region27: #{generator_forward.1} parent=1 // pred_check_branch
      %50 = sbr.rel (0) target = $region29
    $region28: #{generator_forward.1} parent=1 // pred_region
      _
    $region29: #{generator_forward.1} parent=1 // pred_fallthru
      _
    // Predicated region
    $region30: #{generator_forward.1} parent=1 // pred_check
      _
    $region31: #{generator_forward.1} parent=1 // pred_check_branch
      %52 = sbr.rel (0) target = $region33
    $region32: #{generator_forward.1} parent=1 // pred_region
      %s54 = ssub.s32 3072, 3072
      %55 = vsyncadd [#allocation7], %s54
      %s56 = sshll.u32 [#allocation8], 4
      %s57 = int_to_ptr.vmem [resolvable:$true] %s56
      %62 = dma.hbm_to_vmem [thread:$0]  %s7, 3072, %s57, [#allocation7], 64, 64, 4
    $region33: #{generator_forward.1} parent=1 // pred_fallthru
      _
    // Predicated region
    $region34: #{generator_forward.1} parent=1 // pred_check
      _
    $region35: #{generator_forward.1} parent=1 // pred_check_branch
      %64 = sbr.rel (0) target = $region37
    $region36: #{generator_forward.1} parent=1 // pred_region
      _
    $region37: #{generator_forward.1} parent=1 // pred_fallthru
      _
    // Predicated region
    $region38: #{generator_forward.1} parent=1 // pred_check
      _
    $region39: #{generator_forward.1} parent=1 // pred_check_branch
      %66 = sbr.rel (0) target = $region41
    $region40: #{generator_forward.1} parent=1 // pred_region
      %67 = dma.done [#allocation4], 1024
    $region41: #{generator_forward.1} parent=1 // pred_fallthru
      _
    // Predicated region
    $region42: #{generator_forward.1} parent=1 // pred_check
      _
    $region43: #{generator_forward.1} parent=1 // pred_check_branch
      %69 = sbr.rel (0) target = $region45
    $region44: #{generator_forward.1} parent=1 // pred_region
      %70 = dma.done [#allocation7], 2048
    $region45: #{generator_forward.1} parent=1 // pred_fallthru
      _
    // Predicated region
    $region46: #{generator_forward.1} parent=1 // pred_check
      _
    $region47: #{generator_forward.1} parent=1 // pred_check_branch
      %72 = sbr.rel (0) target = $region49
    $region48: #{generator_forward.1} parent=1 // pred_region
      %73 = dma.done [#allocation7], 3072
    $region49: #{generator_forward.1} parent=1 // pred_fallthru
      _
    %v75 = vld [vmem:[%s0] sm:$0xf]
    %76 = vst [vmem:[#allocation2 + $0x8] sm:$0xf] %v75
    %v77 = vld [vmem:[#allocation2 + $0x8] sm:$0xf]
    %v78 = vld [vmem:[#allocation3] sm:$0xf]
    %v79 = vld [vmem:[#allocation3 + $0x4] sm:$0xf]
    %v80 = vld [vmem:[#allocation3 + $0x8] sm:$0xf]
    %v81 = vld [vmem:[#allocation3 + $0xc] sm:$0xf]
    %v82 = vld [vmem:[#allocation3 + $0x10] sm:$0xf]
    %v83 = vld [vmem:[#allocation3 + $0x14] sm:$0xf]
    %v84 = vld [vmem:[#allocation3 + $0x18] sm:$0xf]
    %v85 = vld [vmem:[#allocation3 + $0x1c] sm:$0xf]
    %v86 = vld [vmem:[#allocation3 + $0x20] sm:$0xf]
    %v87 = vld [vmem:[#allocation3 + $0x24] sm:$0xf]
    %v88 = vld [vmem:[#allocation3 + $0x28] sm:$0xf]
    %v89 = vld [vmem:[#allocation3 + $0x2c] sm:$0xf]
    %v90 = vld [vmem:[#allocation3 + $0x30] sm:$0xf]
    %v91 = vld [vmem:[#allocation3 + $0x34] sm:$0xf]
    %v92 = vld [vmem:[#allocation3 + $0x38] sm:$0xf]
    %v93 = vld [vmem:[#allocation3 + $0x3c] sm:$0xf]
    %v110 = vunpack.c.l.b16 %v78
    %v111 = vunpack.c.l.b16 %v79
    %v112 = vunpack.c.l.b16 %v80
    %v113 = vunpack.c.l.b16 %v81
    %v114 = vunpack.c.l.b16 %v82
    %v115 = vunpack.c.l.b16 %v83
    %v116 = vunpack.c.l.b16 %v84
    %v117 = vunpack.c.l.b16 %v85
    %v118 = vunpack.c.l.b16 %v86
    %v119 = vunpack.c.l.b16 %v87
    %v120 = vunpack.c.l.b16 %v88
    %v121 = vunpack.c.l.b16 %v89
    %v122 = vunpack.c.l.b16 %v90
    %v123 = vunpack.c.l.b16 %v91
    %v124 = vunpack.c.l.b16 %v92
    %v125 = vunpack.c.l.b16 %v93
    %v126 = vpack.c.b16 %v111, %v110
    %v127 = vpack.c.b16 %v113, %v112
    %v128 = vpack.c.b16 %v115, %v114
    %v129 = vpack.c.b16 %v117, %v116
    %v130 = vpack.c.b16 %v119, %v118
    %v131 = vpack.c.b16 %v121, %v120
    %v132 = vpack.c.b16 %v123, %v122
    %v133 = vpack.c.b16 %v125, %v124
    %142 = vmatprep.subr.bf16.mxu0 0
    %143 = vmatpush1.bf16.msra.mxu0 %v126
    %144 = vmatprep.subr.bf16.mxu0 0
    %145 = vmatpush1.bf16.msra.mxu0 %v127
    %146 = vmatprep.subr.bf16.mxu0 0
    %147 = vmatpush1.bf16.msra.mxu0 %v128
    %148 = vmatprep.subr.bf16.mxu0 0
    %149 = vmatpush1.bf16.msra.mxu0 %v129
    %150 = vmatprep.subr.bf16.mxu0 0
    %151 = vmatpush1.bf16.msra.mxu0 %v130
    %152 = vmatprep.subr.bf16.mxu0 0
    %153 = vmatpush1.bf16.msra.mxu0 %v131
    %154 = vmatprep.subr.bf16.mxu0 0
    %155 = vmatpush1.bf16.msra.mxu0 %v132
    %156 = vmatprep.subr.bf16.mxu0 0
    %157 = vmatpush1.bf16.msra.mxu0 %v133
    %158 = vmatprep.subr.bf16.mxu0 0
    %159 = vmatpush1.bf16.msra.mxu0 0
    %160 = vmatprep.subr.bf16.mxu0 0
    %161 = vmatpush1.bf16.msra.mxu0 0
    %162 = vmatprep.subr.bf16.mxu0 0
    %163 = vmatpush1.bf16.msra.mxu0 0
    %164 = vmatprep.subr.bf16.mxu0 0
    %165 = vmatpush1.bf16.msra.mxu0 0
    %166 = vmatprep.subr.bf16.mxu0 0
    %167 = vmatpush1.bf16.msra.mxu0 0
    %168 = vmatprep.subr.bf16.mxu0 0
    %169 = vmatpush1.bf16.msra.mxu0 0
    %170 = vmatprep.subr.bf16.mxu0 0
    %171 = vmatpush1.bf16.msra.mxu0 0
    %172 = vmatprep.subr.bf16.mxu0 0
    %173 = vmatpush1.bf16.msra.mxu0 0
    %174 = vmatprep.mubr.bf16.mxu0 0
    %175 = vmatmul.mubr.bf16.gmra.mrb[0].mxu0 %v77
    %v176 = vpop.f32.mrb[0].mxu0
    %v177 = vadd.f32 0.0, %v176
    %v178 = vpop.f32.mrb[0].mxu0
    %v179 = vpop.f32.mrb[0].mxu0
    %v180 = vpop.f32.mrb[0].mxu0
    %181 = vdwg.mxu0
    %v182 = vrot.slane %v177, 4
    %v183 = vadd.f32 %v177, %v182
    %v184 = vrot.slane %v183, 2
    %v185 = vadd.f32 %v183, %v184
    %v186 = vrot.slane %v185, 1
    %v187 = vadd.f32 %v185, %v186
    %v188 = vmul.f32 %v187, 0.125
    %v189 = vsub.f32 %v177, %v188
    %v190 = vmul.f32 %v189, %v189
    %v191 = vrot.slane %v190, 4
    %v192 = vadd.f32 %v190, %v191
    %v193 = vrot.slane %v192, 2
    %v194 = vadd.f32 %v192, %v193
    %v195 = vrot.slane %v194, 1
    %v196 = vadd.f32 %v194, %v195
    %v197 = vmul.f32 %v196, 0.125
    %v198 = vld [vmem:[%s2] sm:$0x1]
    %v199 = vadd.f32 %v197, 1e-05
    %v200 = vrsqrt.pop %v199
    %v201 = vmul.f32 %v198, %v200
    %v202 = vld [vmem:[%s3] sm:$0x1]
    %v203 = vmul.f32 %v188, %v201
    %v204 = vsub.f32 %v202, %v203
    %v206 = vlaneseq
    %v207 = vshrl.u32 %v206, 7
    %v208 = vsub.s32 0, %v207
    %v209 = vrot.slane %v201, %v208
    %v211 = vmul.f32 %v177, %v209
    %v213 = vlaneseq
    %v214 = vshrl.u32 %v213, 7
    %v215 = vsub.s32 0, %v214
    %v216 = vrot.slane %v204, %v215
    %v218 = vadd.f32 %v211, %v216
    %v219 = vmax.f32 %v218, 0.0
    %v220 = vpack.c.bf16 %v219, %v219
    %221 = vst [vmem:[#allocation2 + $0x4] sm:$0xf] %v220
    %v222 = vld [vmem:[#allocation2 + $0x4] sm:$0xff]
    %v223 = vld [vmem:[#allocation6] sm:$0xf]
    %v224 = vld [vmem:[#allocation6 + $0x4] sm:$0xf]
    %v225 = vld [vmem:[#allocation6 + $0x8] sm:$0xf]
    %v226 = vld [vmem:[#allocation6 + $0xc] sm:$0xf]
    %v227 = vld [vmem:[#allocation6 + $0x10] sm:$0xf]
    %v228 = vld [vmem:[#allocation6 + $0x14] sm:$0xf]
    %v229 = vld [vmem:[#allocation6 + $0x18] sm:$0xf]
    %v230 = vld [vmem:[#allocation6 + $0x1c] sm:$0xf]
    %v231 = vld [vmem:[#allocation6 + $0x20] sm:$0xf]
    %v232 = vld [vmem:[#allocation6 + $0x24] sm:$0xf]
    %v233 = vld [vmem:[#allocation6 + $0x28] sm:$0xf]
    %v234 = vld [vmem:[#allocation6 + $0x2c] sm:$0xf]
    %v235 = vld [vmem:[#allocation6 + $0x30] sm:$0xf]
    %v236 = vld [vmem:[#allocation6 + $0x34] sm:$0xf]
    %v237 = vld [vmem:[#allocation6 + $0x38] sm:$0xf]
    %v238 = vld [vmem:[#allocation6 + $0x3c] sm:$0xf]
    %v239 = vld [vmem:[#allocation6 + $0x40] sm:$0xf]
    %v240 = vld [vmem:[#allocation6 + $0x44] sm:$0xf]
    %v241 = vld [vmem:[#allocation6 + $0x48] sm:$0xf]
    %v242 = vld [vmem:[#allocation6 + $0x4c] sm:$0xf]
    %v243 = vld [vmem:[#allocation6 + $0x50] sm:$0xf]
    %v244 = vld [vmem:[#allocation6 + $0x54] sm:$0xf]
    %v245 = vld [vmem:[#allocation6 + $0x58] sm:$0xf]
    %v246 = vld [vmem:[#allocation6 + $0x5c] sm:$0xf]
    %v247 = vld [vmem:[#allocation6 + $0x60] sm:$0xf]
    %v248 = vld [vmem:[#allocation6 + $0x64] sm:$0xf]
    %v249 = vld [vmem:[#allocation6 + $0x68] sm:$0xf]
    %v250 = vld [vmem:[#allocation6 + $0x6c] sm:$0xf]
    %v251 = vld [vmem:[#allocation6 + $0x70] sm:$0xf]
    %v252 = vld [vmem:[#allocation6 + $0x74] sm:$0xf]
    %v253 = vld [vmem:[#allocation6 + $0x78] sm:$0xf]
    %v254 = vld [vmem:[#allocation6 + $0x7c] sm:$0xf]
    %v256 = vunpack.c.l.b16 %v222
    %v257 = vunpack.c.h.b16 %v222
    %v258 = vpack.c.b16 %v256, %v256
    %v259 = vpack.c.b16 %v257, %v257
    %v294 = vunpack.c.l.b16 %v223
    %v295 = vunpack.c.l.b16 %v224
    %v296 = vunpack.c.l.b16 %v225
    %v297 = vunpack.c.l.b16 %v226
    %v298 = vunpack.c.l.b16 %v227
    %v299 = vunpack.c.l.b16 %v228
    %v300 = vunpack.c.l.b16 %v229
    %v301 = vunpack.c.l.b16 %v230
    %v302 = vunpack.c.l.b16 %v231
    %v303 = vunpack.c.l.b16 %v232
    %v304 = vunpack.c.l.b16 %v233
    %v305 = vunpack.c.l.b16 %v234
    %v306 = vunpack.c.l.b16 %v235
    %v307 = vunpack.c.l.b16 %v236
    %v308 = vunpack.c.l.b16 %v237
    %v309 = vunpack.c.l.b16 %v238
    %v310 = vunpack.c.l.b16 %v239
    %v311 = vunpack.c.l.b16 %v240
    %v312 = vunpack.c.l.b16 %v241
    %v313 = vunpack.c.l.b16 %v242
    %v314 = vunpack.c.l.b16 %v243
    %v315 = vunpack.c.l.b16 %v244
    %v316 = vunpack.c.l.b16 %v245
    %v317 = vunpack.c.l.b16 %v246
    %v318 = vunpack.c.l.b16 %v247
    %v319 = vunpack.c.l.b16 %v248
    %v320 = vunpack.c.l.b16 %v249
    %v321 = vunpack.c.l.b16 %v250
    %v322 = vunpack.c.l.b16 %v251
    %v323 = vunpack.c.l.b16 %v252
    %v324 = vunpack.c.l.b16 %v253
    %v325 = vunpack.c.l.b16 %v254
    %v326 = vpack.c.b16 %v295, %v294
    %v327 = vpack.c.b16 %v297, %v296
    %v328 = vpack.c.b16 %v299, %v298
    %v329 = vpack.c.b16 %v301, %v300
    %v330 = vpack.c.b16 %v303, %v302
    %v331 = vpack.c.b16 %v305, %v304
    %v332 = vpack.c.b16 %v307, %v306
    %v333 = vpack.c.b16 %v309, %v308
    %v334 = vpack.c.b16 %v311, %v310
    %v335 = vpack.c.b16 %v313, %v312
    %v336 = vpack.c.b16 %v315, %v314
    %v337 = vpack.c.b16 %v317, %v316
    %v338 = vpack.c.b16 %v319, %v318
    %v339 = vpack.c.b16 %v321, %v320
    %v340 = vpack.c.b16 %v323, %v322
    %v341 = vpack.c.b16 %v325, %v324
    %358 = vmatprep.subr.bf16.mxu0 0
    %359 = vmatpush1.bf16.msra.mxu0 %v326
    %360 = vmatprep.subr.bf16.mxu0 0
    %361 = vmatpush1.bf16.msra.mxu0 %v327
    %362 = vmatprep.subr.bf16.mxu0 0
    %363 = vmatpush1.bf16.msra.mxu0 %v328
    %364 = vmatprep.subr.bf16.mxu0 0
    %365 = vmatpush1.bf16.msra.mxu0 %v329
    %366 = vmatprep.subr.bf16.mxu0 0
    %367 = vmatpush1.bf16.msra.mxu0 %v330
    %368 = vmatprep.subr.bf16.mxu0 0
    %369 = vmatpush1.bf16.msra.mxu0 %v331
    %370 = vmatprep.subr.bf16.mxu0 0
    %371 = vmatpush1.bf16.msra.mxu0 %v332
    %372 = vmatprep.subr.bf16.mxu0 0
    %373 = vmatpush1.bf16.msra.mxu0 %v333
    %374 = vmatprep.subr.bf16.mxu0 0
    %375 = vmatpush1.bf16.msra.mxu0 %v334
    %376 = vmatprep.subr.bf16.mxu0 0
    %377 = vmatpush1.bf16.msra.mxu0 %v335
    %378 = vmatprep.subr.bf16.mxu0 0
    %379 = vmatpush1.bf16.msra.mxu0 %v336
    %380 = vmatprep.subr.bf16.mxu0 0
    %381 = vmatpush1.bf16.msra.mxu0 %v337
    %382 = vmatprep.subr.bf16.mxu0 0
    %383 = vmatpush1.bf16.msra.mxu0 %v338
    %384 = vmatprep.subr.bf16.mxu0 0
    %385 = vmatpush1.bf16.msra.mxu0 %v339
    %386 = vmatprep.subr.bf16.mxu0 0
    %387 = vmatpush1.bf16.msra.mxu0 %v340
    %388 = vmatprep.subr.bf16.mxu0 0
    %389 = vmatpush1.bf16.msra.mxu0 %v341
    %390 = vmatprep.mubr.bf16.mxu0 %v259
    %391 = vmatmul.mubr.bf16.gmra.mrb[0].mxu0 %v258
    %v392 = vpop.f32.mrb[0].mxu0
    %v393 = vadd.f32 0.0, %v392
    %v394 = vpop.f32.mrb[0].mxu0
    %v395 = vpop.f32.mrb[0].mxu0
    %v396 = vpop.f32.mrb[0].mxu0
    %397 = vdwg.mxu0
    %v398 = vrot.slane %v393, 4
    %v399 = vadd.f32 %v393, %v398
    %v400 = vrot.slane %v399, 2
    %v401 = vadd.f32 %v399, %v400
    %v402 = vrot.slane %v401, 1
    %v403 = vadd.f32 %v401, %v402
    %v404 = vmul.f32 %v403, 0.125
    %v405 = vsub.f32 %v393, %v404
    %v406 = vmul.f32 %v405, %v405
    %v407 = vrot.slane %v406, 4
    %v408 = vadd.f32 %v406, %v407
    %v409 = vrot.slane %v408, 2
    %v410 = vadd.f32 %v408, %v409
    %v411 = vrot.slane %v410, 1
    %v412 = vadd.f32 %v410, %v411
    %v413 = vmul.f32 %v412, 0.125
    %v414 = vld [vmem:[%s5] sm:$0x1]
    %v415 = vadd.f32 %v413, 1e-05
    %v416 = vrsqrt.pop %v415
    %v417 = vmul.f32 %v414, %v416
    %v418 = vld [vmem:[%s6] sm:$0x1]
    %v419 = vmul.f32 %v404, %v417
    %v420 = vsub.f32 %v418, %v419
    %v422 = vlaneseq
    %v423 = vshrl.u32 %v422, 7
    %v424 = vsub.s32 0, %v423
    %v425 = vrot.slane %v417, %v424
    %v427 = vmul.f32 %v393, %v425
    %v429 = vlaneseq
    %v430 = vshrl.u32 %v429, 7
    %v431 = vsub.s32 0, %v430
    %v432 = vrot.slane %v420, %v431
    %v434 = vadd.f32 %v427, %v432
    %v435 = vmax.f32 %v434, 0.0
    %v436 = vpack.c.bf16 %v435, %v435
    %437 = vst [vmem:[#allocation2] sm:$0xf] %v436
    %v438 = vld [vmem:[#allocation2] sm:$0xff]
    %v439 = vld [vmem:[#allocation2 + $0x8] sm:$0xf]
    %v440 = vld [vmem:[#allocation8] sm:$0xf]
    %v441 = vld [vmem:[#allocation8 + $0x4] sm:$0xf]
    %v442 = vld [vmem:[#allocation8 + $0x8] sm:$0xf]
    %v443 = vld [vmem:[#allocation8 + $0xc] sm:$0xf]
    %v444 = vld [vmem:[#allocation8 + $0x10] sm:$0xf]
    %v445 = vld [vmem:[#allocation8 + $0x14] sm:$0xf]
    %v446 = vld [vmem:[#allocation8 + $0x18] sm:$0xf]
    %v447 = vld [vmem:[#allocation8 + $0x1c] sm:$0xf]
    %v448 = vld [vmem:[#allocation8 + $0x20] sm:$0xf]
    %v449 = vld [vmem:[#allocation8 + $0x24] sm:$0xf]
    %v450 = vld [vmem:[#allocation8 + $0x28] sm:$0xf]
    %v451 = vld [vmem:[#allocation8 + $0x2c] sm:$0xf]
    %v452 = vld [vmem:[#allocation8 + $0x30] sm:$0xf]
    %v453 = vld [vmem:[#allocation8 + $0x34] sm:$0xf]
    %v454 = vld [vmem:[#allocation8 + $0x38] sm:$0xf]
    %v455 = vld [vmem:[#allocation8 + $0x3c] sm:$0xf]
    %v456 = vld [vmem:[#allocation8 + $0x40] sm:$0xf]
    %v457 = vld [vmem:[#allocation8 + $0x44] sm:$0xf]
    %v458 = vld [vmem:[#allocation8 + $0x48] sm:$0xf]
    %v459 = vld [vmem:[#allocation8 + $0x4c] sm:$0xf]
    %v460 = vld [vmem:[#allocation8 + $0x50] sm:$0xf]
    %v461 = vld [vmem:[#allocation8 + $0x54] sm:$0xf]
    %v462 = vld [vmem:[#allocation8 + $0x58] sm:$0xf]
    %v463 = vld [vmem:[#allocation8 + $0x5c] sm:$0xf]
    %v464 = vld [vmem:[#allocation8 + $0x60] sm:$0xf]
    %v465 = vld [vmem:[#allocation8 + $0x64] sm:$0xf]
    %v466 = vld [vmem:[#allocation8 + $0x68] sm:$0xf]
    %v467 = vld [vmem:[#allocation8 + $0x6c] sm:$0xf]
    %v468 = vld [vmem:[#allocation8 + $0x70] sm:$0xf]
    %v469 = vld [vmem:[#allocation8 + $0x74] sm:$0xf]
    %v470 = vld [vmem:[#allocation8 + $0x78] sm:$0xf]
    %v471 = vld [vmem:[#allocation8 + $0x7c] sm:$0xf]
    %v472 = vld [vmem:[#allocation8 + $0x80] sm:$0xf]
    %v473 = vld [vmem:[#allocation8 + $0x84] sm:$0xf]
    %v474 = vld [vmem:[#allocation8 + $0x88] sm:$0xf]
    %v475 = vld [vmem:[#allocation8 + $0x8c] sm:$0xf]
    %v476 = vld [vmem:[#allocation8 + $0x90] sm:$0xf]
    %v477 = vld [vmem:[#allocation8 + $0x94] sm:$0xf]
    %v478 = vld [vmem:[#allocation8 + $0x98] sm:$0xf]
    %v479 = vld [vmem:[#allocation8 + $0x9c] sm:$0xf]
    %v480 = vld [vmem:[#allocation8 + $0xa0] sm:$0xf]
    %v481 = vld [vmem:[#allocation8 + $0xa4] sm:$0xf]
    %v482 = vld [vmem:[#allocation8 + $0xa8] sm:$0xf]
    %v483 = vld [vmem:[#allocation8 + $0xac] sm:$0xf]
    %v484 = vld [vmem:[#allocation8 + $0xb0] sm:$0xf]
    %v485 = vld [vmem:[#allocation8 + $0xb4] sm:$0xf]
    %v486 = vld [vmem:[#allocation8 + $0xb8] sm:$0xf]
    %v487 = vld [vmem:[#allocation8 + $0xbc] sm:$0xf]
    %v488 = vld [vmem:[%s8] sm:$0x1]
    %v490 = vlaneseq
    %v491 = vshrl.u32 %v490, 7
    %v492 = vsub.s32 0, %v491
    %v493 = vrot.slane %v488, %v492
    %v497 = vunpack.c.l.b16 %v438
    %v498 = vunpack.c.h.b16 %v438
    %v499 = vunpack.c.l.b16 %v439
    %v500 = vpack.c.b16 %v497, %v497
    %v501 = vpack.c.b16 %v498, %v498
    %v502 = vpack.c.b16 %v499, %v499
    %v554 = vunpack.c.l.b16 %v440
    %v555 = vunpack.c.l.b16 %v441
    %v556 = vunpack.c.l.b16 %v442
    %v557 = vunpack.c.l.b16 %v443
    %v558 = vunpack.c.l.b16 %v444
    %v559 = vunpack.c.l.b16 %v445
    %v560 = vunpack.c.l.b16 %v446
    %v561 = vunpack.c.l.b16 %v447
    %v562 = vunpack.c.l.b16 %v448
    %v563 = vunpack.c.l.b16 %v449
    %v564 = vunpack.c.l.b16 %v450
    %v565 = vunpack.c.l.b16 %v451
    %v566 = vunpack.c.l.b16 %v452
    %v567 = vunpack.c.l.b16 %v453
    %v568 = vunpack.c.l.b16 %v454
    %v569 = vunpack.c.l.b16 %v455
    %v570 = vunpack.c.l.b16 %v456
    %v571 = vunpack.c.l.b16 %v457
    %v572 = vunpack.c.l.b16 %v458
    %v573 = vunpack.c.l.b16 %v459
    %v574 = vunpack.c.l.b16 %v460
    %v575 = vunpack.c.l.b16 %v461
    %v576 = vunpack.c.l.b16 %v462
    %v577 = vunpack.c.l.b16 %v463
    %v578 = vunpack.c.l.b16 %v464
    %v579 = vunpack.c.l.b16 %v465
    %v580 = vunpack.c.l.b16 %v466
    %v581 = vunpack.c.l.b16 %v467
    %v582 = vunpack.c.l.b16 %v468
    %v583 = vunpack.c.l.b16 %v469
    %v584 = vunpack.c.l.b16 %v470
    %v585 = vunpack.c.l.b16 %v471
    %v586 = vunpack.c.l.b16 %v472
    %v587 = vunpack.c.l.b16 %v473
    %v588 = vunpack.c.l.b16 %v474
    %v589 = vunpack.c.l.b16 %v475
    %v590 = vunpack.c.l.b16 %v476
    %v591 = vunpack.c.l.b16 %v477
    %v592 = vunpack.c.l.b16 %v478
    %v593 = vunpack.c.l.b16 %v479
    %v594 = vunpack.c.l.b16 %v480
    %v595 = vunpack.c.l.b16 %v481
    %v596 = vunpack.c.l.b16 %v482
    %v597 = vunpack.c.l.b16 %v483
    %v598 = vunpack.c.l.b16 %v484
    %v599 = vunpack.c.l.b16 %v485
    %v600 = vunpack.c.l.b16 %v486
    %v601 = vunpack.c.l.b16 %v487
    %v602 = vpack.c.b16 %v555, %v554
    %v603 = vpack.c.b16 %v557, %v556
    %v604 = vpack.c.b16 %v559, %v558
    %v605 = vpack.c.b16 %v561, %v560
    %v606 = vpack.c.b16 %v563, %v562
    %v607 = vpack.c.b16 %v565, %v564
    %v608 = vpack.c.b16 %v567, %v566
    %v609 = vpack.c.b16 %v569, %v568
    %v610 = vpack.c.b16 %v571, %v570
    %v611 = vpack.c.b16 %v573, %v572
    %v612 = vpack.c.b16 %v575, %v574
    %v613 = vpack.c.b16 %v577, %v576
    %v614 = vpack.c.b16 %v579, %v578
    %v615 = vpack.c.b16 %v581, %v580
    %v616 = vpack.c.b16 %v583, %v582
    %v617 = vpack.c.b16 %v585, %v584
    %v618 = vpack.c.b16 %v587, %v586
    %v619 = vpack.c.b16 %v589, %v588
    %v620 = vpack.c.b16 %v591, %v590
    %v621 = vpack.c.b16 %v593, %v592
    %v622 = vpack.c.b16 %v595, %v594
    %v623 = vpack.c.b16 %v597, %v596
    %v624 = vpack.c.b16 %v599, %v598
    %v625 = vpack.c.b16 %v601, %v600
    %650 = vmatprep.subr.bf16.mxu0 0
    %651 = vmatpush1.bf16.msra.mxu0 %v602
    %652 = vmatprep.subr.bf16.mxu0 0
    %653 = vmatpush1.bf16.msra.mxu0 %v603
    %654 = vmatprep.subr.bf16.mxu0 0
    %655 = vmatpush1.bf16.msra.mxu0 %v604
    %656 = vmatprep.subr.bf16.mxu0 0
    %657 = vmatpush1.bf16.msra.mxu0 %v605
    %658 = vmatprep.subr.bf16.mxu0 0
    %659 = vmatpush1.bf16.msra.mxu0 %v606
    %660 = vmatprep.subr.bf16.mxu0 0
    %661 = vmatpush1.bf16.msra.mxu0 %v607
    %662 = vmatprep.subr.bf16.mxu0 0
    %663 = vmatpush1.bf16.msra.mxu0 %v608
    %664 = vmatprep.subr.bf16.mxu0 0
    %665 = vmatpush1.bf16.msra.mxu0 %v609
    %666 = vmatprep.subr.bf16.mxu0 0
    %667 = vmatpush1.bf16.msra.mxu0 %v610
    %668 = vmatprep.subr.bf16.mxu0 0
    %669 = vmatpush1.bf16.msra.mxu0 %v611
    %670 = vmatprep.subr.bf16.mxu0 0
    %671 = vmatpush1.bf16.msra.mxu0 %v612
    %672 = vmatprep.subr.bf16.mxu0 0
    %673 = vmatpush1.bf16.msra.mxu0 %v613
    %674 = vmatprep.subr.bf16.mxu0 0
    %675 = vmatpush1.bf16.msra.mxu0 %v614
    %676 = vmatprep.subr.bf16.mxu0 0
    %677 = vmatpush1.bf16.msra.mxu0 %v615
    %678 = vmatprep.subr.bf16.mxu0 0
    %679 = vmatpush1.bf16.msra.mxu0 %v616
    %680 = vmatprep.subr.bf16.mxu0 0
    %681 = vmatpush1.bf16.msra.mxu0 %v617
    %682 = vmatprep.mubr.bf16.mxu0 %v501
    %683 = vmatmul.mubr.bf16.gmra.mrb[0].mxu0 %v500
    %v684 = vpop.f32.mrb[0].mxu0
    %v685 = vadd.f32 %v493, %v684
    %v686 = vpop.f32.mrb[0].mxu0
    %v687 = vpop.f32.mrb[0].mxu0
    %v688 = vpop.f32.mrb[0].mxu0
    %689 = vdwg.mxu0
    %690 = vmatprep.subr.bf16.mxu0 0
    %691 = vmatpush1.bf16.msra.mxu0 %v618
    %692 = vmatprep.subr.bf16.mxu0 0
    %693 = vmatpush1.bf16.msra.mxu0 %v619
    %694 = vmatprep.subr.bf16.mxu0 0
    %695 = vmatpush1.bf16.msra.mxu0 %v620
    %696 = vmatprep.subr.bf16.mxu0 0
    %697 = vmatpush1.bf16.msra.mxu0 %v621
    %698 = vmatprep.subr.bf16.mxu0 0
    %699 = vmatpush1.bf16.msra.mxu0 %v622
    %700 = vmatprep.subr.bf16.mxu0 0
    %701 = vmatpush1.bf16.msra.mxu0 %v623
    %702 = vmatprep.subr.bf16.mxu0 0
    %703 = vmatpush1.bf16.msra.mxu0 %v624
    %704 = vmatprep.subr.bf16.mxu0 0
    %705 = vmatpush1.bf16.msra.mxu0 %v625
    %706 = vmatprep.subr.bf16.mxu0 0
    %707 = vmatpush1.bf16.msra.mxu0 0
    %708 = vmatprep.subr.bf16.mxu0 0
    %709 = vmatpush1.bf16.msra.mxu0 0
    %710 = vmatprep.subr.bf16.mxu0 0
    %711 = vmatpush1.bf16.msra.mxu0 0
    %712 = vmatprep.subr.bf16.mxu0 0
    %713 = vmatpush1.bf16.msra.mxu0 0
    %714 = vmatprep.subr.bf16.mxu0 0
    %715 = vmatpush1.bf16.msra.mxu0 0
    %716 = vmatprep.subr.bf16.mxu0 0
    %717 = vmatpush1.bf16.msra.mxu0 0
    %718 = vmatprep.subr.bf16.mxu0 0
    %719 = vmatpush1.bf16.msra.mxu0 0
    %720 = vmatprep.subr.bf16.mxu0 0
    %721 = vmatpush1.bf16.msra.mxu0 0
    %722 = vmatprep.mubr.bf16.mxu0 0
    %723 = vmatmul.mubr.bf16.gmra.mrb[0].mxu0 %v502
    %v724 = vpop.f32.mrb[0].mxu0
    %v725 = vadd.f32 %v685, %v724
    %v726 = vpop.f32.mrb[0].mxu0
    %v727 = vpop.f32.mrb[0].mxu0
    %v728 = vpop.f32.mrb[0].mxu0
    %729 = vdwg.mxu0
    %730 = vst [vmem:[#allocation9] sm:$0xff] %v725
    // Predicated region
    $region50: #{generator_forward.1} parent=1 // pred_check
      _
    $region51: #{generator_forward.1} parent=1 // pred_check_branch
      %732 = sbr.rel (0) target = $region53
    $region52: #{generator_forward.1} parent=1 // pred_region
      %s734 = ssub.s32 128, 128
      %735 = vsyncadd [#allocation5], %s734
      %s737 = sshll.u32 [#allocation9], 4
      %s738 = int_to_ptr.vmem [resolvable:$true] %s737
      %740 = dma.vmem_to_hbm [thread:$0]  %s738, 128, %s9, [#allocation5]
    $region53: #{generator_forward.1} parent=1 // pred_fallthru
      _
    // Predicated region
    $region54: #{generator_forward.1} parent=1 // pred_check
      _
    $region55: #{generator_forward.1} parent=1 // pred_check_branch
      %742 = sbr.rel (0) target = $region57
    $region56: #{generator_forward.1} parent=1 // pred_region
      %743 = dma.done [#allocation5], 128
    $region57: #{generator_forward.1} parent=1 // pred_fallthru
      _
    %744 = vsyncpa [#allocation4], 1
    %745 = vsyncpa [#allocation7], 1
    %746 = vsyncpa [#allocation5], 1

</llo_original>
